<compile_context>
chip_gen: v6e
topology: v6e:2x2x1
jax: 0.10.0
libtpu: 0.0.40
codegen_flags: <defaults>
</compile_context>

<pallas_src>
import math

import numpy as np
import jax
import jax.numpy as jnp
from jax.experimental import pallas as pl
from jax.experimental.pallas import tpu as pltpu

NEG_SLOPE = 0.01  # nn.LeakyReLU default


def _leaky_relu(x):
    return jnp.where(x > 0, x, NEG_SLOPE * x)


def make_banded_weight(w_hwio, W):
    """Fold kw taps + width zero-padding of a SAME 3x3 conv into banded matrices.

    w_hwio: (3, 3, Cin, Cout) conv weight.
    Returns M with shape (3, W*Cin, W*Cout) such that, with rows(h) = image row h flattened
    to length W*Cin (index w*Cin + ci) and out row h flattened to W*Cout (index w*Cout + co):
        out[h] = rows(h-1) @ M[0] + rows(h) @ M[1] + rows(h+1) @ M[2]
    where rows outside [0, H) contribute zero (i.e. SAME padding).
    """
    w = np.asarray(w_hwio, dtype=np.float32)
    _, _, Cin, Cout = w.shape
    M = np.zeros((3, W * Cin, W * Cout), np.float32)
    for kw in range(3):
        for wo in range(W):
            wi = wo + kw - 1
            if 0 <= wi < W:
                M[:, wi * Cin:(wi + 1) * Cin, wo * Cout:(wo + 1) * Cout] = w[:, kw]
    return jnp.asarray(M)


def enc_kernel(x_ref, w1_ref, b1_ref, w2_ref, b2_ref, o_ref):
    # x_ref : (1, H, W*Cin)        one image, rows flattened lane-dense
    # w1_ref: (3, W*Cin,  W*Cout)  banded conv1 weights (one matrix per kernel row kh)
    # b1_ref: (1, W*Cout)          conv1 bias tiled along W
    # w2_ref: (3, W*Cout, W*Cout)  banded conv2 weights
    # b2_ref: (1, W*Cout)
    # o_ref : (1, H, W*Cout)       lane-dense output (W*Cout >= 128 -> unmasked stores)
    H = o_ref.shape[1]
    cdt = w1_ref.dtype  # MXU operand dtype (bf16 or f32); accumulation stays f32

    def conv3x3(rows, w_ref, b_ref):
        lhs = rows.astype(cdt)                                         # (H, W*C)
        d0 = jnp.dot(lhs, w_ref[0], preferred_element_type=jnp.float32)
        d1 = jnp.dot(lhs, w_ref[1], preferred_element_type=jnp.float32)
        d2 = jnp.dot(lhs, w_ref[2], preferred_element_type=jnp.float32)
        zrow = jnp.zeros((1, d1.shape[1]), jnp.float32)
        up = jnp.concatenate([zrow, d0[:H - 1, :]], axis=0)            # row h-1 contribution
        dn = jnp.concatenate([d2[1:, :], zrow], axis=0)                # row h+1 contribution
        return _leaky_relu(up + d1 + dn + b_ref[...])                  # (H, W*Cout) f32

    y1 = conv3x3(x_ref[0], w1_ref, b1_ref)     # conv1 + LeakyReLU
    y2 = conv3x3(y1, w2_ref, b2_ref)           # conv2 + LeakyReLU (intermediate stays in vregs)
    o_ref[0] = y2.astype(o_ref.dtype)


def _enc_pallas(x_flat, w1b, b1t, w2b, b2t):
    N, H, WCin = x_flat.shape
    WCout = w1b.shape[2]
    # TODO(synk): for production resolutions, tile H with a 1-row halo (block (1, th+2, W*C))
    #             and size the tile against v7x's 64 MiB VMEM (about half a v6e tile).
    return pl.pallas_call(
        enc_kernel,
        out_shape=jax.ShapeDtypeStruct((N, H, WCout), jnp.float32),
        grid_spec=pltpu.PrefetchScalarGridSpec(
            num_scalar_prefetch=0,
            grid=(N,),
            in_specs=[
                pl.BlockSpec((1, H, WCin), lambda n: (n, 0, 0)),
                pl.BlockSpec((3, WCin, WCout), lambda n: (0, 0, 0)),
                pl.BlockSpec((1, WCout), lambda n: (0, 0)),
                pl.BlockSpec((3, WCout, WCout), lambda n: (0, 0, 0)),
                pl.BlockSpec((1, WCout), lambda n: (0, 0)),
            ],
            out_specs=pl.BlockSpec((1, H, WCout), lambda n: (n, 0, 0)),
        ),
        compiler_params=pltpu.CompilerParams(
            dimension_semantics=("parallel",),
            vmem_limit_bytes=32 * 1024 * 1024,
        ),
    )(x_flat, w1b, b1t, w2b, b2t)


def enc_forward(src_nchw, tgt_nchw, params, compute_dtype=jnp.bfloat16):
    """Replicates Enc.forward: returns (seq(src), seq(tgt)); NCHW in / NCHW out."""
    w1, b1, w2, b2 = params            # w: (3,3,Cin,Cout) f32 (HWIO), b: (Cout,) f32
    B, Cin, H, W = src_nchw.shape
    Cout = w1.shape[-1]

    # Fuse src + tgt into one pallas_call: grid = 2*B, weights DMA'd once, better pipelining.
    x = jnp.concatenate([src_nchw, tgt_nchw], axis=0)                 # (2B, Cin, H, W)
    x = jnp.transpose(x, (0, 2, 3, 1)).reshape(2 * B, H, W * Cin)     # lane-dense rows
    x = x.astype(compute_dtype)

    w1b = make_banded_weight(w1, W).astype(compute_dtype)             # (3, W*Cin,  W*Cout)
    w2b = make_banded_weight(w2, W).astype(compute_dtype)             # (3, W*Cout, W*Cout)
    b1t = jnp.tile(jnp.reshape(b1, (1, Cout)), (1, W)).astype(jnp.float32)
    b2t = jnp.tile(jnp.reshape(b2, (1, Cout)), (1, W)).astype(jnp.float32)

    y = _enc_pallas(x, w1b, b1t, w2b, b2t)                            # (2B, H, W*Cout) f32
    y = y.reshape(2 * B, H, W, Cout).transpose(0, 3, 1, 2)            # back to NCHW
    return y[:B], y[B:]


def init_params(key, infm, outfm):
    """Mimics PyTorch Conv2d init scaled by sqrt(6) (Enc.initc). Weights in HWIO layout."""
    k1, k2, k3, k4 = jax.random.split(key, 4)
    fan1, fan2 = infm * 9, outfm * 9
    w1 = jax.random.uniform(k1, (3, 3, infm, outfm), jnp.float32, -1.0, 1.0) * (
        math.sqrt(6.0) / math.sqrt(fan1))
    w2 = jax.random.uniform(k2, (3, 3, outfm, outfm), jnp.float32, -1.0, 1.0) * (
        math.sqrt(6.0) / math.sqrt(fan2))
    b1 = jax.random.uniform(k3, (outfm,), jnp.float32,
                            -1.0 / math.sqrt(fan1), 1.0 / math.sqrt(fan1))
    b2 = jax.random.uniform(k4, (outfm,), jnp.float32,
                            -1.0 / math.sqrt(fan2), 1.0 / math.sqrt(fan2))
    return w1, b1, w2, b2


def _reference_forward(x_nchw, params):
    """Pure-JAX (lax.conv) reference of seq(x) for validation."""
    w1, b1, w2, b2 = params

    def conv(x, w, b):
        y = jax.lax.conv_general_dilated(
            x, w, window_strides=(1, 1), padding="SAME",
            dimension_numbers=("NCHW", "HWIO", "NCHW"))
        return y + b.reshape(1, -1, 1, 1)

    y = _leaky_relu(conv(x_nchw, w1, b1))
    y = _leaky_relu(conv(y, w2, b2))
    return y


if __name__ == "__main__":
    infm, outfm = 4, 8
    B, H, W = 2, 16, 16

    key = jax.random.PRNGKey(0)
    kp, ks, kt = jax.random.split(key, 3)
    params = init_params(kp, infm, outfm)

    src = jax.random.normal(ks, (B, infm, H, W), jnp.float32)
    tgt = jax.random.normal(kt, (B, infm, H, W), jnp.float32)

    ref_src = _reference_forward(src, params)
    ref_tgt = _reference_forward(tgt, params)

    # Exact path: f32 MXU operands -> must match the conv reference tightly.
    out_src, out_tgt = enc_forward(src, tgt, params, compute_dtype=jnp.float32)
    out_src = jax.block_until_ready(out_src)
    out_tgt = jax.block_until_ready(out_tgt)
    assert out_src.shape == (B, outfm, H, W) and out_tgt.shape == (B, outfm, H, W)
    assert jnp.allclose(out_src, ref_src, atol=1e-4, rtol=1e-4)
    assert jnp.allclose(out_tgt, ref_tgt, atol=1e-4, rtol=1e-4)

    # Perf path (recommended on v6e/v7x): bf16 MXU operands, f32 accumulation.
    bf_src, bf_tgt = enc_forward(src, tgt, params, compute_dtype=jnp.bfloat16)
    bf_src = jax.block_until_ready(bf_src)
    bf_tgt = jax.block_until_ready(bf_tgt)
    assert jnp.allclose(bf_src, ref_src, atol=2e-1, rtol=5e-2)
    assert jnp.allclose(bf_tgt, ref_tgt, atol=2e-1, rtol=5e-2)

    print("KERNEL_OK")
</pallas_src>

<mosaic_0001>
module attributes {stable_mosaic.version = 11 : i64} {
  func.func @enc_kernel(%arg0: i32, %arg1: memref<1x16x64xf32, #tpu.memory_space<vmem>>, %arg2: memref<3x64x128xf32, #tpu.memory_space<vmem>>, %arg3: memref<1x128xf32, #tpu.memory_space<vmem>>, %arg4: memref<3x128x128xf32, #tpu.memory_space<vmem>>, %arg5: memref<1x128xf32, #tpu.memory_space<vmem>>, %arg6: memref<1x16x128xf32, #tpu.memory_space<vmem>>) attributes {dimension_semantics = [#tpu.dimension_semantics<parallel>], iteration_bounds = array<i64: 4>, scalar_prefetch = 0 : i64, scratch_operands = 0 : i64, tpu.core_type = #tpu.core_type<tc>, window_params = [{transform_indices = @transform_0, window_bounds = array<i64: 1, 16, 64>}, {pipeline_mode = #tpu.pipeline_mode<synchronous>, transform_indices = @transform_1, window_bounds = array<i64: 3, 64, 128>}, {pipeline_mode = #tpu.pipeline_mode<synchronous>, transform_indices = @transform_2, window_bounds = array<i64: 1, 128>}, {pipeline_mode = #tpu.pipeline_mode<synchronous>, transform_indices = @transform_3, window_bounds = array<i64: 3, 128, 128>}, {pipeline_mode = #tpu.pipeline_mode<synchronous>, transform_indices = @transform_4, window_bounds = array<i64: 1, 128>}, {transform_indices = @transform_5, window_bounds = array<i64: 1, 16, 128>}]} {
    %c0 = arith.constant 0 : index
    %c0_0 = arith.constant 0 : index
    %c0_1 = arith.constant 0 : index
    %0 = vector.load %arg1[%c0, %c0_0, %c0_1] : memref<1x16x64xf32, #tpu.memory_space<vmem>>, vector<1x16x64xf32>
    %1 = vector.shape_cast %0 : vector<1x16x64xf32> to vector<16x64xf32>
    %c0_2 = arith.constant 0 : index
    %c0_3 = arith.constant 0 : index
    %c0_4 = arith.constant 0 : index
    %2 = vector.load %arg2[%c0_2, %c0_3, %c0_4] : memref<3x64x128xf32, #tpu.memory_space<vmem>>, vector<1x64x128xf32>
    %3 = vector.shape_cast %2 : vector<1x64x128xf32> to vector<64x128xf32>
    %cst = arith.constant dense<0.000000e+00> : vector<16x128xf32>
    %4 = tpu.matmul %1, %3, %cst {dimension_numbers = #tpu.dot_dimension_numbers<[1], [0], [0], [1], [0, 0, 1, 1], [], []>} : vector<16x64xf32>, vector<64x128xf32>, vector<16x128xf32> -> vector<16x128xf32>
    %c1 = arith.constant 1 : index
    %c0_5 = arith.constant 0 : index
    %c0_6 = arith.constant 0 : index
    %5 = vector.load %arg2[%c1, %c0_5, %c0_6] : memref<3x64x128xf32, #tpu.memory_space<vmem>>, vector<1x64x128xf32>
    %6 = vector.shape_cast %5 : vector<1x64x128xf32> to vector<64x128xf32>
    %cst_7 = arith.constant dense<0.000000e+00> : vector<16x128xf32>
    %7 = tpu.matmul %1, %6, %cst_7 {dimension_numbers = #tpu.dot_dimension_numbers<[1], [0], [0], [1], [0, 0, 1, 1], [], []>} : vector<16x64xf32>, vector<64x128xf32>, vector<16x128xf32> -> vector<16x128xf32>
    %c2 = arith.constant 2 : index
    %c0_8 = arith.constant 0 : index
    %c0_9 = arith.constant 0 : index
    %8 = vector.load %arg2[%c2, %c0_8, %c0_9] : memref<3x64x128xf32, #tpu.memory_space<vmem>>, vector<1x64x128xf32>
    %9 = vector.shape_cast %8 : vector<1x64x128xf32> to vector<64x128xf32>
    %cst_10 = arith.constant dense<0.000000e+00> : vector<16x128xf32>
    %10 = tpu.matmul %1, %9, %cst_10 {dimension_numbers = #tpu.dot_dimension_numbers<[1], [0], [0], [1], [0, 0, 1, 1], [], []>} : vector<16x64xf32>, vector<64x128xf32>, vector<16x128xf32> -> vector<16x128xf32>
    %cst_11 = arith.constant 0.000000e+00 : f32
    %11 = vector.broadcast %cst_11 : f32 to vector<1x128xf32>
    %12 = vector.extract_strided_slice %4 {offsets = [0, 0], sizes = [15, 128], strides = [1, 1]} : vector<16x128xf32> to vector<15x128xf32>
    %13 = tpu.concatenate %11, %12 in 0 : vector<1x128xf32>, vector<15x128xf32> -> vector<16x128xf32>
    %14 = vector.extract_strided_slice %10 {offsets = [1, 0], sizes = [15, 128], strides = [1, 1]} : vector<16x128xf32> to vector<15x128xf32>
    %15 = tpu.concatenate %14, %11 in 0 : vector<15x128xf32>, vector<1x128xf32> -> vector<16x128xf32>
    %16 = arith.addf %13, %7 : vector<16x128xf32>
    %17 = arith.addf %16, %15 : vector<16x128xf32>
    %c0_12 = arith.constant 0 : index
    %c0_13 = arith.constant 0 : index
    %18 = vector.load %arg3[%c0_12, %c0_13] : memref<1x128xf32, #tpu.memory_space<vmem>>, vector<1x128xf32>
    %19 = vector.broadcast %18 : vector<1x128xf32> to vector<16x128xf32>
    %20 = arith.addf %17, %19 : vector<16x128xf32>
    %cst_14 = arith.constant 0.000000e+00 : f32
    %21 = vector.broadcast %cst_14 : f32 to vector<16x128xf32>
    %22 = arith.cmpf ogt, %20, %21 : vector<16x128xf32>
    %cst_15 = arith.constant 0.00999999977 : f32
    %23 = vector.broadcast %cst_15 : f32 to vector<16x128xf32>
    %24 = arith.mulf %23, %20 : vector<16x128xf32>
    %25 = arith.select %22, %20, %24 : vector<16x128xi1>, vector<16x128xf32>
    %c0_16 = arith.constant 0 : index
    %c0_17 = arith.constant 0 : index
    %c0_18 = arith.constant 0 : index
    %26 = vector.load %arg4[%c0_16, %c0_17, %c0_18] : memref<3x128x128xf32, #tpu.memory_space<vmem>>, vector<1x128x128xf32>
    %27 = vector.shape_cast %26 : vector<1x128x128xf32> to vector<128x128xf32>
    %cst_19 = arith.constant dense<0.000000e+00> : vector<16x128xf32>
    %28 = tpu.matmul %25, %27, %cst_19 {dimension_numbers = #tpu.dot_dimension_numbers<[1], [0], [0], [1], [0, 0, 1, 1], [], []>} : vector<16x128xf32>, vector<128x128xf32>, vector<16x128xf32> -> vector<16x128xf32>
    %c1_20 = arith.constant 1 : index
    %c0_21 = arith.constant 0 : index
    %c0_22 = arith.constant 0 : index
    %29 = vector.load %arg4[%c1_20, %c0_21, %c0_22] : memref<3x128x128xf32, #tpu.memory_space<vmem>>, vector<1x128x128xf32>
    %30 = vector.shape_cast %29 : vector<1x128x128xf32> to vector<128x128xf32>
    %cst_23 = arith.constant dense<0.000000e+00> : vector<16x128xf32>
    %31 = tpu.matmul %25, %30, %cst_23 {dimension_numbers = #tpu.dot_dimension_numbers<[1], [0], [0], [1], [0, 0, 1, 1], [], []>} : vector<16x128xf32>, vector<128x128xf32>, vector<16x128xf32> -> vector<16x128xf32>
    %c2_24 = arith.constant 2 : index
    %c0_25 = arith.constant 0 : index
    %c0_26 = arith.constant 0 : index
    %32 = vector.load %arg4[%c2_24, %c0_25, %c0_26] : memref<3x128x128xf32, #tpu.memory_space<vmem>>, vector<1x128x128xf32>
    %33 = vector.shape_cast %32 : vector<1x128x128xf32> to vector<128x128xf32>
    %cst_27 = arith.constant dense<0.000000e+00> : vector<16x128xf32>
    %34 = tpu.matmul %25, %33, %cst_27 {dimension_numbers = #tpu.dot_dimension_numbers<[1], [0], [0], [1], [0, 0, 1, 1], [], []>} : vector<16x128xf32>, vector<128x128xf32>, vector<16x128xf32> -> vector<16x128xf32>
    %cst_28 = arith.constant 0.000000e+00 : f32
    %35 = vector.broadcast %cst_28 : f32 to vector<1x128xf32>
    %36 = vector.extract_strided_slice %28 {offsets = [0, 0], sizes = [15, 128], strides = [1, 1]} : vector<16x128xf32> to vector<15x128xf32>
    %37 = tpu.concatenate %35, %36 in 0 : vector<1x128xf32>, vector<15x128xf32> -> vector<16x128xf32>
    %38 = vector.extract_strided_slice %34 {offsets = [1, 0], sizes = [15, 128], strides = [1, 1]} : vector<16x128xf32> to vector<15x128xf32>
    %39 = tpu.concatenate %38, %35 in 0 : vector<15x128xf32>, vector<1x128xf32> -> vector<16x128xf32>
    %40 = arith.addf %37, %31 : vector<16x128xf32>
    %41 = arith.addf %40, %39 : vector<16x128xf32>
    %c0_29 = arith.constant 0 : index
    %c0_30 = arith.constant 0 : index
    %42 = vector.load %arg5[%c0_29, %c0_30] : memref<1x128xf32, #tpu.memory_space<vmem>>, vector<1x128xf32>
    %43 = vector.broadcast %42 : vector<1x128xf32> to vector<16x128xf32>
    %44 = arith.addf %41, %43 : vector<16x128xf32>
    %cst_31 = arith.constant 0.000000e+00 : f32
    %45 = vector.broadcast %cst_31 : f32 to vector<16x128xf32>
    %46 = arith.cmpf ogt, %44, %45 : vector<16x128xf32>
    %cst_32 = arith.constant 0.00999999977 : f32
    %47 = vector.broadcast %cst_32 : f32 to vector<16x128xf32>
    %48 = arith.mulf %47, %44 : vector<16x128xf32>
    %49 = arith.select %46, %44, %48 : vector<16x128xi1>, vector<16x128xf32>
    %c0_33 = arith.constant 0 : index
    %c0_34 = arith.constant 0 : index
    %c0_35 = arith.constant 0 : index
    %50 = vector.load %arg6[%c0_33, %c0_34, %c0_35] : memref<1x16x128xf32, #tpu.memory_space<vmem>>, vector<1x16x128xf32>
    %51 = vector.shape_cast %50 : vector<1x16x128xf32> to vector<16x128xf32>
    %52 = vector.shape_cast %49 : vector<16x128xf32> to vector<1x16x128xf32>
    tpu.vector_store %arg6[%c0_33, %c0_34, %c0_35], %52 {strides = array<i32>} : memref<1x16x128xf32, #tpu.memory_space<vmem>>, vector<1x16x128xf32>,
    return
  }
  func.func @transform_0(%arg0: i32) -> (i32, i32, i32) {
    %c0_i32 = arith.constant 0 : i32
    %c0_i32_0 = arith.constant 0 : i32
    %c0_i32_1 = arith.constant 0 : i32
    return %arg0, %c0_i32, %c0_i32_0 : i32, i32, i32
  }
  func.func @transform_1(%arg0: i32) -> (i32, i32, i32) {
    %c0_i32 = arith.constant 0 : i32
    %c0_i32_0 = arith.constant 0 : i32
    %c0_i32_1 = arith.constant 0 : i32
    %c0_i32_2 = arith.constant 0 : i32
    return %c0_i32, %c0_i32_0, %c0_i32_1 : i32, i32, i32
  }
  func.func @transform_2(%arg0: i32) -> (i32, i32) {
    %c0_i32 = arith.constant 0 : i32
    %c0_i32_0 = arith.constant 0 : i32
    %c0_i32_1 = arith.constant 0 : i32
    return %c0_i32, %c0_i32_0 : i32, i32
  }
  func.func @transform_3(%arg0: i32) -> (i32, i32, i32) {
    %c0_i32 = arith.constant 0 : i32
    %c0_i32_0 = arith.constant 0 : i32
    %c0_i32_1 = arith.constant 0 : i32
    %c0_i32_2 = arith.constant 0 : i32
    return %c0_i32, %c0_i32_0, %c0_i32_1 : i32, i32, i32
  }
  func.func @transform_4(%arg0: i32) -> (i32, i32) {
    %c0_i32 = arith.constant 0 : i32
    %c0_i32_0 = arith.constant 0 : i32
    %c0_i32_1 = arith.constant 0 : i32
    return %c0_i32, %c0_i32_0 : i32, i32
  }
  func.func @transform_5(%arg0: i32) -> (i32, i32, i32) {
    %c0_i32 = arith.constant 0 : i32
    %c0_i32_0 = arith.constant 0 : i32
    %c0_i32_1 = arith.constant 0 : i32
    return %arg0, %c0_i32, %c0_i32_0 : i32, i32, i32
  }
}

</mosaic_0001>

<llo_original>
// kernel: tpu_custom_call.1
$region0: #{tpu_custom_call.1}
  #allocation0 [shape = 'u32[]', space=smem, size = 0x4, offset = 0x4, fixed_abs, tag = 'smem constant byte address 0x4 - core index']
  #allocation1 [shape = 'u32[144,128]{1,0:T(1,128)}', space=vmem, size = 0x12000, scoped, tag = 'internal scratch']
  %s0 = inlined_call_operand.hbm [shape: f32[4,16,64], index: 0, kind: input, shape index: {}]
  %s1 = inlined_call_operand.hbm [shape: f32[3,64,128], index: 1, kind: input, shape index: {}]
  %s2 = inlined_call_operand.vmem [shape: f32[1,128], index: 2, kind: input, shape index: {}]
  %s3 = inlined_call_operand.hbm [shape: f32[3,128,128], index: 3, kind: input, shape index: {}]
  %s4 = inlined_call_operand.vmem [shape: f32[1,128], index: 4, kind: input, shape index: {}]
  %s5 = inlined_call_operand.hbm [shape: f32[4,16,128], index: 5, kind: output, shape index: {}]
  %s6 = sld [smem:[#allocation0]]
  $region65: #{tpu_custom_call.1} parent=0
    _
  %s8 = ssub.s32 1, %s6
  %s9 = scalar_select 0, %s8, %s6
  $region1: #{tpu_custom_call.1} parent=0
    #allocation2 [shape = 'u8[16384]{0}', space=vmem, size = 0x4000, scoped, tag = 'input window, operand 0']
    #allocation3 [shape = 's32[2]{0}', space=sflag, size = 0x8, scoped, tag = 'scoped memory for tpu_custom_call.1']
    #allocation4 [shape = 's32[2]{0}', space=sflag, size = 0x8, scoped, tag = 'scoped memory for tpu_custom_call.1']
    #allocation5 [shape = 'u8[98304]{0}', space=vmem, size = 0x18000, scoped, tag = 'input window, operand 1, single buffered']
    #allocation6 [shape = 's32[1]{0}', space=sflag, size = 0x4, scoped, tag = 'scoped memory for tpu_custom_call.1']
    #allocation7 [shape = 'u8[196608]{0}', space=vmem, size = 0x30000, scoped, tag = 'input window, operand 3, single buffered']
    #allocation8 [shape = 'u8[16384]{0}', space=vmem, size = 0x4000, scoped, tag = 'output window, operand 0']
    %10 = vsyncpa [#allocation3], 0
    %s11 = scalar_lea.sflag [#allocation3], 1
    %12 = vsyncpa %s11, 0
    %13 = vsyncpa [#allocation6], 0
    %14 = vsyncpa [#allocation4], 0
    %s15 = scalar_lea.sflag [#allocation4], 1
    %16 = vsyncpa %s15, 0
    loop: start=0, step=1, limit=6
    $region2: #{tpu_custom_call.1} parent=1 // loop_pre_header
      _
    $region3: #{tpu_custom_call.1} parent=1 // loop_header
      %s18 = sphi 0, %s22
      %p19 = scmp.ge.s32.totalorder %s18, 6
      %s28 = sphi 0, %s30
      %s31 = sphi 0, %s28
      %s32 = sphi 0, %s31
      %s48 = sphi 0, %s32
      %s52 = sphi 0, %s52
      %s54 = sphi 0, %s52
      %s55 = sphi 0, %s54
      %s69 = sphi 0, %s55
      %s73 = sphi 0, %s73
      %s75 = sphi 0, %s73
      %s76 = sphi 0, %s75
      %s90 = sphi 0, %s76
      %s94 = sphi 0, %s94
      %s96 = sphi 0, %s94
      %s97 = sphi 0, %s96
      %s111 = sphi 0, %s97
      %s115 = sphi 0, %s115
      %s117 = sphi 0, %s115
      %s118 = sphi 0, %s117
      %s132 = sphi 0, %s118
      %s138 = sphi 0, %s140
      %s141 = sphi 0, %s138
      %s142 = sphi 0, %s141
      %s158 = sphi 0, %s142
    $region4: #{tpu_custom_call.1} parent=1 // loop_header_branch
      %21 = sbr.rel (%p19) target = $region8
    $region5: #{tpu_custom_call.1} parent=1 // loop_body
      %s23 = ssub.s32 %s18, 1
      %s24 = ssub.s32 %s18, 2
      %s25 = sadd.s32 %s18, 1
      %s26 = ssub.s32 %s18, %s25
      %p27 = scmp.eq.s32.totalorder %s26, 0
      %s29 = sadd.s32 %s28, 1
      %s30 = scalar_select %p27, %s28, %s29
      %p33 = pneg %p27
      %p34 = scmp.eq.s32.totalorder %s18, 3
      %p35 = por %p33, %p34
      %p36 = scmp.ne.s32.totalorder %s28, %s31
      %p37 = scmp.eq.s32.totalorder %s18, 0
      %p38 = por %p36, %p37
      %p39 = scmp.ne.s32.totalorder %s28, %s31
      %p40 = scmp.eq.s32.totalorder %s23, 3
      %p41 = por %p39, %p40
      %p42 = scmp.ne.s32.totalorder %s31, %s32
      %p43 = scmp.eq.s32.totalorder %s23, 0
      %p44 = por %p42, %p43
      %p45 = scmp.ne.s32.totalorder %s31, %s32
      %p46 = scmp.eq.s32.totalorder %s24, 3
      %p47 = por %p45, %p46
      %p49 = scmp.ne.s32.totalorder %s32, %s48
      %p50 = scmp.eq.s32.totalorder %s24, 0
      %p51 = por %p49, %p50
      %s53 = sadd.s32 %s52, 1
      %p56 = scmp.eq.s32.totalorder %s18, 3
      %p57 = scmp.ne.s32.totalorder %s52, %s54
      %p58 = scmp.eq.s32.totalorder %s18, 0
      %p59 = por %p57, %p58
      %p60 = scmp.ne.s32.totalorder %s52, %s54
      %p61 = scmp.eq.s32.totalorder %s23, 3
      %p62 = por %p60, %p61
      %p63 = scmp.ne.s32.totalorder %s54, %s55
      %p64 = scmp.eq.s32.totalorder %s23, 0
      %p65 = por %p63, %p64
      %p66 = scmp.ne.s32.totalorder %s54, %s55
      %p67 = scmp.eq.s32.totalorder %s24, 3
      %p68 = por %p66, %p67
      %p70 = scmp.ne.s32.totalorder %s55, %s69
      %p71 = scmp.eq.s32.totalorder %s24, 0
      %p72 = por %p70, %p71
      %s74 = sadd.s32 %s73, 1
      %p77 = scmp.eq.s32.totalorder %s18, 3
      %p78 = scmp.ne.s32.totalorder %s73, %s75
      %p79 = scmp.eq.s32.totalorder %s18, 0
      %p80 = por %p78, %p79
      %p81 = scmp.ne.s32.totalorder %s73, %s75
      %p82 = scmp.eq.s32.totalorder %s23, 3
      %p83 = por %p81, %p82
      %p84 = scmp.ne.s32.totalorder %s75, %s76
      %p85 = scmp.eq.s32.totalorder %s23, 0
      %p86 = por %p84, %p85
      %p87 = scmp.ne.s32.totalorder %s75, %s76
      %p88 = scmp.eq.s32.totalorder %s24, 3
      %p89 = por %p87, %p88
      %p91 = scmp.ne.s32.totalorder %s76, %s90
      %p92 = scmp.eq.s32.totalorder %s24, 0
      %p93 = por %p91, %p92
      %s95 = sadd.s32 %s94, 1
      %p98 = scmp.eq.s32.totalorder %s18, 3
      %p99 = scmp.ne.s32.totalorder %s94, %s96
      %p100 = scmp.eq.s32.totalorder %s18, 0
      %p101 = por %p99, %p100
      %p102 = scmp.ne.s32.totalorder %s94, %s96
      %p103 = scmp.eq.s32.totalorder %s23, 3
      %p104 = por %p102, %p103
      %p105 = scmp.ne.s32.totalorder %s96, %s97
      %p106 = scmp.eq.s32.totalorder %s23, 0
      %p107 = por %p105, %p106
      %p108 = scmp.ne.s32.totalorder %s96, %s97
      %p109 = scmp.eq.s32.totalorder %s24, 3
      %p110 = por %p108, %p109
      %p112 = scmp.ne.s32.totalorder %s97, %s111
      %p113 = scmp.eq.s32.totalorder %s24, 0
      %p114 = por %p112, %p113
      %s116 = sadd.s32 %s115, 1
      %p119 = scmp.eq.s32.totalorder %s18, 3
      %p120 = scmp.ne.s32.totalorder %s115, %s117
      %p121 = scmp.eq.s32.totalorder %s18, 0
      %p122 = por %p120, %p121
      %p123 = scmp.ne.s32.totalorder %s115, %s117
      %p124 = scmp.eq.s32.totalorder %s23, 3
      %p125 = por %p123, %p124
      %p126 = scmp.ne.s32.totalorder %s117, %s118
      %p127 = scmp.eq.s32.totalorder %s23, 0
      %p128 = por %p126, %p127
      %p129 = scmp.ne.s32.totalorder %s117, %s118
      %p130 = scmp.eq.s32.totalorder %s24, 3
      %p131 = por %p129, %p130
      %p133 = scmp.ne.s32.totalorder %s118, %s132
      %p134 = scmp.eq.s32.totalorder %s24, 0
      %p135 = por %p133, %p134
      %s136 = ssub.s32 %s18, %s25
      %p137 = scmp.eq.s32.totalorder %s136, 0
      %s139 = sadd.s32 %s138, 1
      %s140 = scalar_select %p137, %s138, %s139
      %p143 = pneg %p137
      %p144 = scmp.eq.s32.totalorder %s18, 3
      %p145 = por %p143, %p144
      %p146 = scmp.ne.s32.totalorder %s138, %s141
      %p147 = scmp.eq.s32.totalorder %s18, 0
      %p148 = por %p146, %p147
      %p149 = scmp.ne.s32.totalorder %s138, %s141
      %p150 = scmp.eq.s32.totalorder %s23, 3
      %p151 = por %p149, %p150
      %p152 = scmp.ne.s32.totalorder %s141, %s142
      %p153 = scmp.eq.s32.totalorder %s23, 0
      %p154 = por %p152, %p153
      %p155 = scmp.ne.s32.totalorder %s141, %s142
      %p156 = scmp.eq.s32.totalorder %s24, 3
      %p157 = por %p155, %p156
      %p159 = scmp.ne.s32.totalorder %s142, %s158
      %p160 = scmp.eq.s32.totalorder %s24, 0
      %p161 = por %p159, %p160
      %p162 = scmp.le.s32.totalorder 1, %s18
      %p163 = scmp.lt.s32.totalorder %s18, 5
      %p164 = pnand %p162, %p163
      %p165 = pneg %p164
      // Predicated region
      $region9: #{tpu_custom_call.1} parent=5 // pred_check
        _
      $region10: #{tpu_custom_call.1} parent=5 // pred_check_branch
        %167 = sbr.rel (%p164) target = $region12
      $region11: #{tpu_custom_call.1} parent=5 // pred_region
        %s168 = ssub.s32 %s18, 1
        // Predicated region
        $region13: #{tpu_custom_call.1} parent=11 // pred_check
          %p169 = pneg %p65
        $region14: #{tpu_custom_call.1} parent=11 // pred_check_branch
          %171 = sbr.rel (%p169) target = $region16
        $region15: #{tpu_custom_call.1} parent=11 // pred_region
          %s173 = ssub.s32 3072, 3072
          %174 = vsyncadd [#allocation6], %s173
          %s175 = sshll.u32 [#allocation5], 4
          %s176 = int_to_ptr.vmem [resolvable:$true] %s175
          %181 = dma.hbm_to_vmem [thread:$0]  %s1, 3072, %s176, [#allocation6], 128, 128, 8
        $region16: #{tpu_custom_call.1} parent=11 // pred_fallthru
          _
        // Predicated region
        $region17: #{tpu_custom_call.1} parent=11 // pred_check
          %p182 = pneg %p86
        $region18: #{tpu_custom_call.1} parent=11 // pred_check_branch
          %184 = sbr.rel (%p182) target = $region20
        $region19: #{tpu_custom_call.1} parent=11 // pred_region
          _
        $region20: #{tpu_custom_call.1} parent=11 // pred_fallthru
          _
        // Predicated region
        $region21: #{tpu_custom_call.1} parent=11 // pred_check
          %p185 = pneg %p107
        $region22: #{tpu_custom_call.1} parent=11 // pred_check_branch
          %187 = sbr.rel (%p185) target = $region24
        $region23: #{tpu_custom_call.1} parent=11 // pred_region
          %s189 = ssub.s32 6144, 6144
          %190 = vsyncadd [#allocation6], %s189
          %s191 = sshll.u32 [#allocation7], 4
          %s192 = int_to_ptr.vmem [resolvable:$true] %s191
          %197 = dma.hbm_to_vmem [thread:$0]  %s3, 6144, %s192, [#allocation6], 128, 128, 8
        $region24: #{tpu_custom_call.1} parent=11 // pred_fallthru
          _
        // Predicated region
        $region25: #{tpu_custom_call.1} parent=11 // pred_check
          %p198 = pneg %p128
        $region26: #{tpu_custom_call.1} parent=11 // pred_check_branch
          %200 = sbr.rel (%p198) target = $region28
        $region27: #{tpu_custom_call.1} parent=11 // pred_region
          _
        $region28: #{tpu_custom_call.1} parent=11 // pred_fallthru
          _
      $region12: #{tpu_custom_call.1} parent=5 // pred_fallthru
        _
      %p201 = scmp.lt.s32.totalorder %s18, 4
      // Predicated region
      $region29: #{tpu_custom_call.1} parent=5 // pred_check
        %p202 = pneg %p201
      $region30: #{tpu_custom_call.1} parent=5 // pred_check_branch
        %204 = sbr.rel (%p202) target = $region32
      $region31: #{tpu_custom_call.1} parent=5 // pred_region
        // Predicated region
        $region33: #{tpu_custom_call.1} parent=31 // pred_check
          %p205 = pneg %p38
        $region34: #{tpu_custom_call.1} parent=31 // pred_check_branch
          %207 = sbr.rel (%p205) target = $region36
        $region35: #{tpu_custom_call.1} parent=31 // pred_region
          %s208 = sand.u32 %s28, 1
          %s209 = scalar_lea.sflag [#allocation3], %s208
          %s210 = sand.u32 %s28, 1
          %s211 = smul.addr %s210, 16
          %s212 = scalar_lea.vmem [#allocation2], %s211
          %s214 = ssub.s32 256, 256
          %215 = vsyncadd %s209, %s214
          %s216 = smul.addr %s18, 2
          %s217 = smul.addr %s216, 128
          %s218 = scalar_lea.hbm %s0, %s217
          %s219 = sshll.u32 %s212, 4
          %s220 = int_to_ptr.vmem [resolvable:$true] %s219
          %225 = dma.hbm_to_vmem [thread:$0]  %s218, 256, %s220, %s209, 128, 128, 8
        $region36: #{tpu_custom_call.1} parent=31 // pred_fallthru
          _
      $region32: #{tpu_custom_call.1} parent=5 // pred_fallthru
        _
      %p226 = scmp.le.s32.totalorder 1, %s18
      %p227 = scmp.lt.s32.totalorder %s18, 5
      %p228 = pnand %p226, %p227
      %p229 = pneg %p228
      // Predicated region
      $region37: #{tpu_custom_call.1} parent=5 // pred_check
        _
      $region38: #{tpu_custom_call.1} parent=5 // pred_check_branch
        %231 = sbr.rel (%p228) target = $region40
      $region39: #{tpu_custom_call.1} parent=5 // pred_region
        %s232 = ssub.s32 %s18, 1
        %s233 = sand.u32 %s31, 1
        %s234 = scalar_lea.sflag [#allocation3], %s233
        %s235 = sand.u32 %s31, 1
        %s236 = smul.addr %s235, 16
        %s237 = scalar_lea.vmem [#allocation2], %s236
        // Predicated region
        $region41: #{tpu_custom_call.1} parent=39 // pred_check
          %p238 = pneg %p44
        $region42: #{tpu_custom_call.1} parent=39 // pred_check_branch
          %240 = sbr.rel (%p238) target = $region44
        $region43: #{tpu_custom_call.1} parent=39 // pred_region
          %241 = dma.done %s234, 256
        $region44: #{tpu_custom_call.1} parent=39 // pred_fallthru
          _
        // Predicated region
        $region45: #{tpu_custom_call.1} parent=39 // pred_check
          %p242 = pneg %p65
        $region46: #{tpu_custom_call.1} parent=39 // pred_check_branch
          %244 = sbr.rel (%p242) target = $region48
        $region47: #{tpu_custom_call.1} parent=39 // pred_region
          %245 = dma.done [#allocation6], 3072
        $region48: #{tpu_custom_call.1} parent=39 // pred_fallthru
          _
        // Predicated region
        $region49: #{tpu_custom_call.1} parent=39 // pred_check
          %p246 = pneg %p107
        $region50: #{tpu_custom_call.1} parent=39 // pred_check_branch
          %248 = sbr.rel (%p246) target = $region52
        $region51: #{tpu_custom_call.1} parent=39 // pred_region
          %249 = dma.done [#allocation6], 6144
        $region52: #{tpu_custom_call.1} parent=39 // pred_fallthru
          _
        %s250 = sand.u32 %s31, 1
        %s251 = scalar_lea.sflag [#allocation3], %s250
        %s252 = sand.u32 %s31, 1
        %s253 = smul.addr %s252, 16
        %s254 = scalar_lea.vmem [#allocation2], %s253
        %p255 = pneg %p44
        %p256 = pneg %p41
        %p257 = pneg %p65
        %p258 = pneg %p62
        %p259 = pneg %p86
        %p260 = pneg %p83
        %p261 = pneg %p107
        %p262 = pneg %p104
        %p263 = pneg %p128
        %p264 = pneg %p125
        %p265 = pneg %p154
        %p266 = pneg %p151
        %s267 = sand.u32 %s141, 1
        %s268 = scalar_lea.sflag [#allocation4], %s267
        %s269 = sand.u32 %s141, 1
        %s270 = smul.addr %s269, 16
        %s271 = scalar_lea.vmem [#allocation8], %s270
        %v272 = vld [vmem:[%s237] sm:$0xff]
        %v273 = vld [vmem:[%s237 + $0x8] sm:$0xff]
        %v274 = vld [vmem:[#allocation5] sm:$0xff]
        %v275 = vld [vmem:[#allocation5 + $0x8] sm:$0xff]
        %v276 = vld [vmem:[#allocation5 + $0x10] sm:$0xff]
        %v277 = vld [vmem:[#allocation5 + $0x18] sm:$0xff]
        %v278 = vld [vmem:[#allocation5 + $0x20] sm:$0xff]
        %v279 = vld [vmem:[#allocation5 + $0x28] sm:$0xff]
        %v280 = vld [vmem:[#allocation5 + $0x30] sm:$0xff]
        %v281 = vld [vmem:[#allocation5 + $0x38] sm:$0xff]
        %vm282 = vcmask 523264
        %v284 = vsel %vm282, %v272, 0
        %v287 = vsel %vm282, %v273, 0
        %289 = vmatprep.subr.mxu0 0.0
        %290 = vmatpush1.msra.mxu0 0.0
        %291 = vmatprep.subr.mxu0 0.0
        %292 = vmatpush1.msra.mxu0 0.0
        %293 = vmatprep.subr.mxu0 0.0
        %294 = vmatpush1.msra.mxu0 0.0
        %295 = vmatprep.subr.mxu0 0.0
        %296 = vmatpush1.msra.mxu0 0.0
        %297 = vmatprep.subr.mxu0 0.0
        %298 = vmatpush1.msra.mxu0 0.0
        %299 = vmatprep.subr.mxu0 0.0
        %300 = vmatpush1.msra.mxu0 0.0
        %301 = vmatprep.subr.mxu0 0.0
        %302 = vmatpush1.msra.mxu0 0.0
        %303 = vmatprep.subr.mxu0 0.0
        %304 = vmatpush1.msra.mxu0 0.0
        %305 = vmatprep.subr.mxu0 0.0
        %306 = vmatpush1.msra.mxu0 %v281
        %307 = vmatprep.subr.mxu0 0.0
        %308 = vmatpush1.msra.mxu0 %v280
        %309 = vmatprep.subr.mxu0 0.0
        %310 = vmatpush1.msra.mxu0 %v279
        %311 = vmatprep.subr.mxu0 0.0
        %312 = vmatpush1.msra.mxu0 %v278
        %313 = vmatprep.subr.mxu0 0.0
        %314 = vmatpush1.msra.mxu0 %v277
        %315 = vmatprep.subr.mxu0 0.0
        %316 = vmatpush1.msra.mxu0 %v276
        %317 = vmatprep.subr.mxu0 0.0
        %318 = vmatpush1.msra.mxu0 %v275
        %319 = vmatprep.subr.mxu0 0.0
        %320 = vmatpush1.msra.mxu0 %v274
        %321 = vmatprep.subr.mxu0 0.0
        %322 = vmatpush2.msra.mxu0 0.0
        %323 = vmatprep.subr.mxu0 0.0
        %324 = vmatpush2.msra.mxu0 0.0
        %325 = vmatprep.subr.mxu0 0.0
        %326 = vmatpush2.msra.mxu0 0.0
        %327 = vmatprep.subr.mxu0 0.0
        %328 = vmatpush2.msra.mxu0 0.0
        %329 = vmatprep.subr.mxu0 0.0
        %330 = vmatpush2.msra.mxu0 0.0
        %331 = vmatprep.subr.mxu0 0.0
        %332 = vmatpush2.msra.mxu0 0.0
        %333 = vmatprep.subr.mxu0 0.0
        %334 = vmatpush2.msra.mxu0 0.0
        %335 = vmatprep.subr.mxu0 0.0
        %336 = vmatpush2.msra.mxu0 0.0
        %337 = vmatprep.subr.mxu0 0.0
        %338 = vmatpush2.msra.mxu0 0.0
        %339 = vmatprep.subr.mxu0 0.0
        %340 = vmatpush2.msra.mxu0 0.0
        %341 = vmatprep.subr.mxu0 0.0
        %342 = vmatpush2.msra.mxu0 0.0
        %343 = vmatprep.subr.mxu0 0.0
        %344 = vmatpush2.msra.mxu0 0.0
        %345 = vmatprep.subr.mxu0 0.0
        %346 = vmatpush2.msra.mxu0 0.0
        %347 = vmatprep.subr.mxu0 0.0
        %348 = vmatpush2.msra.mxu0 0.0
        %349 = vmatprep.subr.mxu0 0.0
        %350 = vmatpush2.msra.mxu0 0.0
        %351 = vmatprep.subr.mxu0 0.0
        %352 = vmatpush2.msra.mxu0 0.0
        %353 = vmatprep.mubr.f32.mxu0 0.0
        %354 = vmatmul.mubr.f32.gmra.mxu0 %v284
        %v355 = vpop.f32.mrf.mxu0
        %v356 = vadd.f32 0.0, %v355
        %v357 = vpop.f32.mrf.mxu0
        %358 = vmatprep.mubr.f32.mxu0 0.0
        %359 = vmatmul.mubr.f32.gmra.mxu0 %v287
        %v360 = vpop.f32.mrf.mxu0
        %v361 = vadd.f32 0.0, %v360
        %v362 = vpop.f32.mrf.mxu0
        %363 = vdwg.mxu0
        %s364 = scalar_lea.vmem [#allocation5], 64
        %v365 = vld [vmem:[%s364] sm:$0xff]
        %v366 = vld [vmem:[%s364 + $0x8] sm:$0xff]
        %v367 = vld [vmem:[%s364 + $0x10] sm:$0xff]
        %v368 = vld [vmem:[%s364 + $0x18] sm:$0xff]
        %v369 = vld [vmem:[%s364 + $0x20] sm:$0xff]
        %v370 = vld [vmem:[%s364 + $0x28] sm:$0xff]
        %v371 = vld [vmem:[%s364 + $0x30] sm:$0xff]
        %v372 = vld [vmem:[%s364 + $0x38] sm:$0xff]
        %373 = vmatprep.subr.mxu0 0.0
        %374 = vmatpush1.msra.mxu0 0.0
        %375 = vmatprep.subr.mxu0 0.0
        %376 = vmatpush1.msra.mxu0 0.0
        %377 = vmatprep.subr.mxu0 0.0
        %378 = vmatpush1.msra.mxu0 0.0
        %379 = vmatprep.subr.mxu0 0.0
        %380 = vmatpush1.msra.mxu0 0.0
        %381 = vmatprep.subr.mxu0 0.0
        %382 = vmatpush1.msra.mxu0 0.0
        %383 = vmatprep.subr.mxu0 0.0
        %384 = vmatpush1.msra.mxu0 0.0
        %385 = vmatprep.subr.mxu0 0.0
        %386 = vmatpush1.msra.mxu0 0.0
        %387 = vmatprep.subr.mxu0 0.0
        %388 = vmatpush1.msra.mxu0 0.0
        %389 = vmatprep.subr.mxu0 0.0
        %390 = vmatpush1.msra.mxu0 %v372
        %391 = vmatprep.subr.mxu0 0.0
        %392 = vmatpush1.msra.mxu0 %v371
        %393 = vmatprep.subr.mxu0 0.0
        %394 = vmatpush1.msra.mxu0 %v370
        %395 = vmatprep.subr.mxu0 0.0
        %396 = vmatpush1.msra.mxu0 %v369
        %397 = vmatprep.subr.mxu0 0.0
        %398 = vmatpush1.msra.mxu0 %v368
        %399 = vmatprep.subr.mxu0 0.0
        %400 = vmatpush1.msra.mxu0 %v367
        %401 = vmatprep.subr.mxu0 0.0
        %402 = vmatpush1.msra.mxu0 %v366
        %403 = vmatprep.subr.mxu0 0.0
        %404 = vmatpush1.msra.mxu0 %v365
        %405 = vmatprep.subr.mxu0 0.0
        %406 = vmatpush2.msra.mxu0 0.0
        %407 = vmatprep.subr.mxu0 0.0
        %408 = vmatpush2.msra.mxu0 0.0
        %409 = vmatprep.subr.mxu0 0.0
        %410 = vmatpush2.msra.mxu0 0.0
        %411 = vmatprep.subr.mxu0 0.0
        %412 = vmatpush2.msra.mxu0 0.0
        %413 = vmatprep.subr.mxu0 0.0
        %414 = vmatpush2.msra.mxu0 0.0
        %415 = vmatprep.subr.mxu0 0.0
        %416 = vmatpush2.msra.mxu0 0.0
        %417 = vmatprep.subr.mxu0 0.0
        %418 = vmatpush2.msra.mxu0 0.0
        %419 = vmatprep.subr.mxu0 0.0
        %420 = vmatpush2.msra.mxu0 0.0
        %421 = vmatprep.subr.mxu0 0.0
        %422 = vmatpush2.msra.mxu0 0.0
        %423 = vmatprep.subr.mxu0 0.0
        %424 = vmatpush2.msra.mxu0 0.0
        %425 = vmatprep.subr.mxu0 0.0
        %426 = vmatpush2.msra.mxu0 0.0
        %427 = vmatprep.subr.mxu0 0.0
        %428 = vmatpush2.msra.mxu0 0.0
        %429 = vmatprep.subr.mxu0 0.0
        %430 = vmatpush2.msra.mxu0 0.0
        %431 = vmatprep.subr.mxu0 0.0
        %432 = vmatpush2.msra.mxu0 0.0
        %433 = vmatprep.subr.mxu0 0.0
        %434 = vmatpush2.msra.mxu0 0.0
        %435 = vmatprep.subr.mxu0 0.0
        %436 = vmatpush2.msra.mxu0 0.0
        %437 = vmatprep.mubr.f32.mxu0 0.0
        %438 = vmatmul.mubr.f32.gmra.mxu0 %v284
        %v439 = vpop.f32.mrf.mxu0
        %v440 = vadd.f32 0.0, %v439
        %v441 = vpop.f32.mrf.mxu0
        %442 = vmatprep.mubr.f32.mxu0 0.0
        %443 = vmatmul.mubr.f32.gmra.mxu0 %v287
        %v444 = vpop.f32.mrf.mxu0
        %v445 = vadd.f32 0.0, %v444
        %v446 = vpop.f32.mrf.mxu0
        %447 = vdwg.mxu0
        %s448 = scalar_lea.vmem [#allocation5], 128
        %v449 = vld [vmem:[%s448] sm:$0xff]
        %v450 = vld [vmem:[%s448 + $0x8] sm:$0xff]
        %v451 = vld [vmem:[%s448 + $0x10] sm:$0xff]
        %v452 = vld [vmem:[%s448 + $0x18] sm:$0xff]
        %v453 = vld [vmem:[%s448 + $0x20] sm:$0xff]
        %v454 = vld [vmem:[%s448 + $0x28] sm:$0xff]
        %v455 = vld [vmem:[%s448 + $0x30] sm:$0xff]
        %v456 = vld [vmem:[%s448 + $0x38] sm:$0xff]
        %457 = vmatprep.subr.mxu0 0.0
        %458 = vmatpush1.msra.mxu0 0.0
        %459 = vmatprep.subr.mxu0 0.0
        %460 = vmatpush1.msra.mxu0 0.0
        %461 = vmatprep.subr.mxu0 0.0
        %462 = vmatpush1.msra.mxu0 0.0
        %463 = vmatprep.subr.mxu0 0.0
        %464 = vmatpush1.msra.mxu0 0.0
        %465 = vmatprep.subr.mxu0 0.0
        %466 = vmatpush1.msra.mxu0 0.0
        %467 = vmatprep.subr.mxu0 0.0
        %468 = vmatpush1.msra.mxu0 0.0
        %469 = vmatprep.subr.mxu0 0.0
        %470 = vmatpush1.msra.mxu0 0.0
        %471 = vmatprep.subr.mxu0 0.0
        %472 = vmatpush1.msra.mxu0 0.0
        %473 = vmatprep.subr.mxu0 0.0
        %474 = vmatpush1.msra.mxu0 %v456
        %475 = vmatprep.subr.mxu0 0.0
        %476 = vmatpush1.msra.mxu0 %v455
        %477 = vmatprep.subr.mxu0 0.0
        %478 = vmatpush1.msra.mxu0 %v454
        %479 = vmatprep.subr.mxu0 0.0
        %480 = vmatpush1.msra.mxu0 %v453
        %481 = vmatprep.subr.mxu0 0.0
        %482 = vmatpush1.msra.mxu0 %v452
        %483 = vmatprep.subr.mxu0 0.0
        %484 = vmatpush1.msra.mxu0 %v451
        %485 = vmatprep.subr.mxu0 0.0
        %486 = vmatpush1.msra.mxu0 %v450
        %487 = vmatprep.subr.mxu0 0.0
        %488 = vmatpush1.msra.mxu0 %v449
        %489 = vmatprep.subr.mxu0 0.0
        %490 = vmatpush2.msra.mxu0 0.0
        %491 = vmatprep.subr.mxu0 0.0
        %492 = vmatpush2.msra.mxu0 0.0
        %493 = vmatprep.subr.mxu0 0.0
        %494 = vmatpush2.msra.mxu0 0.0
        %495 = vmatprep.subr.mxu0 0.0
        %496 = vmatpush2.msra.mxu0 0.0
        %497 = vmatprep.subr.mxu0 0.0
        %498 = vmatpush2.msra.mxu0 0.0
        %499 = vmatprep.subr.mxu0 0.0
        %500 = vmatpush2.msra.mxu0 0.0
        %501 = vmatprep.subr.mxu0 0.0
        %502 = vmatpush2.msra.mxu0 0.0
        %503 = vmatprep.subr.mxu0 0.0
        %504 = vmatpush2.msra.mxu0 0.0
        %505 = vmatprep.subr.mxu0 0.0
        %506 = vmatpush2.msra.mxu0 0.0
        %507 = vmatprep.subr.mxu0 0.0
        %508 = vmatpush2.msra.mxu0 0.0
        %509 = vmatprep.subr.mxu0 0.0
        %510 = vmatpush2.msra.mxu0 0.0
        %511 = vmatprep.subr.mxu0 0.0
        %512 = vmatpush2.msra.mxu0 0.0
        %513 = vmatprep.subr.mxu0 0.0
        %514 = vmatpush2.msra.mxu0 0.0
        %515 = vmatprep.subr.mxu0 0.0
        %516 = vmatpush2.msra.mxu0 0.0
        %517 = vmatprep.subr.mxu0 0.0
        %518 = vmatpush2.msra.mxu0 0.0
        %519 = vmatprep.subr.mxu0 0.0
        %520 = vmatpush2.msra.mxu0 0.0
        %521 = vmatprep.mubr.f32.mxu0 0.0
        %522 = vmatmul.mubr.f32.gmra.mxu0 %v284
        %v523 = vpop.f32.mrf.mxu0
        %v524 = vadd.f32 0.0, %v523
        %v525 = vpop.f32.mrf.mxu0
        %526 = vmatprep.mubr.f32.mxu0 0.0
        %527 = vmatmul.mubr.f32.gmra.mxu0 %v287
        %v528 = vpop.f32.mrf.mxu0
        %v529 = vadd.f32 0.0, %v528
        %v530 = vpop.f32.mrf.mxu0
        %531 = vdwg.mxu0
        %vm534 = vcmask 1040384
        %v535 = vrot.slane %v356, 7
        %v536 = vrot.slane %v361, 7
        %v537 = vsel %vm534, %v535, %v536
        %v540 = vsel %vm534, 0.0, %v535
        %vm543 = vcmask 1046528
        %v544 = vrot.slane %v524, 1
        %v545 = vrot.slane %v529, 1
        %v546 = vsel %vm543, %v544, %v545
        %v549 = vsel %vm543, %v545, 0.0
        %v550 = vadd.f32 %v540, %v440
        %v551 = vadd.f32 %v537, %v445
        %v552 = vadd.f32 %v550, %v546
        %v553 = vadd.f32 %v551, %v549
        %v554 = vld [vmem:[%s2] sm:$0x1]
        %v556 = vlaneseq
        %v557 = vshrl.u32 %v556, 7
        %v558 = vsub.s32 0, %v557
        %v559 = vrot.slane %v554, %v558
        %v561 = vadd.f32 %v552, %v559
        %v562 = vadd.f32 %v553, %v559
        %vm563 = vcmp.gt.f32.partialorder %v561, 0.0
        %vm564 = vcmp.gt.f32.partialorder %v562, 0.0
        %v565 = vmul.f32 %v561, 0.01
        %v566 = vmul.f32 %v562, 0.01
        %v567 = vsel %vm563, %v561, %v565
        %v568 = vsel %vm564, %v562, %v566
        %v569 = vld [vmem:[#allocation7] sm:$0xff]
        %v570 = vld [vmem:[#allocation7 + $0x8] sm:$0xff]
        %v571 = vld [vmem:[#allocation7 + $0x10] sm:$0xff]
        %v572 = vld [vmem:[#allocation7 + $0x18] sm:$0xff]
        %v573 = vld [vmem:[#allocation7 + $0x20] sm:$0xff]
        %v574 = vld [vmem:[#allocation7 + $0x28] sm:$0xff]
        %v575 = vld [vmem:[#allocation7 + $0x30] sm:$0xff]
        %v576 = vld [vmem:[#allocation7 + $0x38] sm:$0xff]
        %v577 = vld [vmem:[#allocation7 + $0x40] sm:$0xff]
        %v578 = vld [vmem:[#allocation7 + $0x48] sm:$0xff]
        %v579 = vld [vmem:[#allocation7 + $0x50] sm:$0xff]
        %v580 = vld [vmem:[#allocation7 + $0x58] sm:$0xff]
        %v581 = vld [vmem:[#allocation7 + $0x60] sm:$0xff]
        %v582 = vld [vmem:[#allocation7 + $0x68] sm:$0xff]
        %v583 = vld [vmem:[#allocation7 + $0x70] sm:$0xff]
        %v584 = vld [vmem:[#allocation7 + $0x78] sm:$0xff]
        %585 = vmatprep.subr.mxu0 0.0
        %586 = vmatpush1.msra.mxu0 %v584
        %587 = vmatprep.subr.mxu0 0.0
        %588 = vmatpush1.msra.mxu0 %v583
        %589 = vmatprep.subr.mxu0 0.0
        %590 = vmatpush1.msra.mxu0 %v582
        %591 = vmatprep.subr.mxu0 0.0
        %592 = vmatpush1.msra.mxu0 %v581
        %593 = vmatprep.subr.mxu0 0.0
        %594 = vmatpush1.msra.mxu0 %v580
        %595 = vmatprep.subr.mxu0 0.0
        %596 = vmatpush1.msra.mxu0 %v579
        %597 = vmatprep.subr.mxu0 0.0
        %598 = vmatpush1.msra.mxu0 %v578
        %599 = vmatprep.subr.mxu0 0.0
        %600 = vmatpush1.msra.mxu0 %v577
        %601 = vmatprep.subr.mxu0 0.0
        %602 = vmatpush1.msra.mxu0 %v576
        %603 = vmatprep.subr.mxu0 0.0
        %604 = vmatpush1.msra.mxu0 %v575
        %605 = vmatprep.subr.mxu0 0.0
        %606 = vmatpush1.msra.mxu0 %v574
        %607 = vmatprep.subr.mxu0 0.0
        %608 = vmatpush1.msra.mxu0 %v573
        %609 = vmatprep.subr.mxu0 0.0
        %610 = vmatpush1.msra.mxu0 %v572
        %611 = vmatprep.subr.mxu0 0.0
        %612 = vmatpush1.msra.mxu0 %v571
        %613 = vmatprep.subr.mxu0 0.0
        %614 = vmatpush1.msra.mxu0 %v570
        %615 = vmatprep.subr.mxu0 0.0
        %616 = vmatpush1.msra.mxu0 %v569
        %617 = vmatprep.subr.mxu0 0.0
        %618 = vmatpush2.msra.mxu0 0.0
        %619 = vmatprep.subr.mxu0 0.0
        %620 = vmatpush2.msra.mxu0 0.0
        %621 = vmatprep.subr.mxu0 0.0
        %622 = vmatpush2.msra.mxu0 0.0
        %623 = vmatprep.subr.mxu0 0.0
        %624 = vmatpush2.msra.mxu0 0.0
        %625 = vmatprep.subr.mxu0 0.0
        %626 = vmatpush2.msra.mxu0 0.0
        %627 = vmatprep.subr.mxu0 0.0
        %628 = vmatpush2.msra.mxu0 0.0
        %629 = vmatprep.subr.mxu0 0.0
        %630 = vmatpush2.msra.mxu0 0.0
        %631 = vmatprep.subr.mxu0 0.0
        %632 = vmatpush2.msra.mxu0 0.0
        %633 = vmatprep.subr.mxu0 0.0
        %634 = vmatpush2.msra.mxu0 0.0
        %635 = vmatprep.subr.mxu0 0.0
        %636 = vmatpush2.msra.mxu0 0.0
        %637 = vmatprep.subr.mxu0 0.0
        %638 = vmatpush2.msra.mxu0 0.0
        %639 = vmatprep.subr.mxu0 0.0
        %640 = vmatpush2.msra.mxu0 0.0
        %641 = vmatprep.subr.mxu0 0.0
        %642 = vmatpush2.msra.mxu0 0.0
        %643 = vmatprep.subr.mxu0 0.0
        %644 = vmatpush2.msra.mxu0 0.0
        %645 = vmatprep.subr.mxu0 0.0
        %646 = vmatpush2.msra.mxu0 0.0
        %647 = vmatprep.subr.mxu0 0.0
        %648 = vmatpush2.msra.mxu0 0.0
        %649 = vmatprep.mubr.f32.mxu0 0.0
        %650 = vmatmul.mubr.f32.gmra.mxu0 %v567
        %v651 = vpop.f32.mrf.mxu0
        %v652 = vadd.f32 0.0, %v651
        %v653 = vpop.f32.mrf.mxu0
        %654 = vmatprep.mubr.f32.mxu0 0.0
        %655 = vmatmul.mubr.f32.gmra.mxu0 %v568
        %v656 = vpop.f32.mrf.mxu0
        %v657 = vadd.f32 0.0, %v656
        %v658 = vpop.f32.mrf.mxu0
        %659 = vdwg.mxu0
        %s660 = scalar_lea.vmem [#allocation7], 128
        %v661 = vld [vmem:[%s660] sm:$0xff]
        %v662 = vld [vmem:[%s660 + $0x8] sm:$0xff]
        %v663 = vld [vmem:[%s660 + $0x10] sm:$0xff]
        %v664 = vld [vmem:[%s660 + $0x18] sm:$0xff]
        %v665 = vld [vmem:[%s660 + $0x20] sm:$0xff]
        %v666 = vld [vmem:[%s660 + $0x28] sm:$0xff]
        %v667 = vld [vmem:[%s660 + $0x30] sm:$0xff]
        %v668 = vld [vmem:[%s660 + $0x38] sm:$0xff]
        %v669 = vld [vmem:[%s660 + $0x40] sm:$0xff]
        %v670 = vld [vmem:[%s660 + $0x48] sm:$0xff]
        %v671 = vld [vmem:[%s660 + $0x50] sm:$0xff]
        %v672 = vld [vmem:[%s660 + $0x58] sm:$0xff]
        %v673 = vld [vmem:[%s660 + $0x60] sm:$0xff]
        %v674 = vld [vmem:[%s660 + $0x68] sm:$0xff]
        %v675 = vld [vmem:[%s660 + $0x70] sm:$0xff]
        %v676 = vld [vmem:[%s660 + $0x78] sm:$0xff]
        %677 = vmatprep.subr.mxu0 0.0
        %678 = vmatpush1.msra.mxu0 %v676
        %679 = vmatprep.subr.mxu0 0.0
        %680 = vmatpush1.msra.mxu0 %v675
        %681 = vmatprep.subr.mxu0 0.0
        %682 = vmatpush1.msra.mxu0 %v674
        %683 = vmatprep.subr.mxu0 0.0
        %684 = vmatpush1.msra.mxu0 %v673
        %685 = vmatprep.subr.mxu0 0.0
        %686 = vmatpush1.msra.mxu0 %v672
        %687 = vmatprep.subr.mxu0 0.0
        %688 = vmatpush1.msra.mxu0 %v671
        %689 = vmatprep.subr.mxu0 0.0
        %690 = vmatpush1.msra.mxu0 %v670
        %691 = vmatprep.subr.mxu0 0.0
        %692 = vmatpush1.msra.mxu0 %v669
        %693 = vmatprep.subr.mxu0 0.0
        %694 = vmatpush1.msra.mxu0 %v668
        %695 = vmatprep.subr.mxu0 0.0
        %696 = vmatpush1.msra.mxu0 %v667
        %697 = vmatprep.subr.mxu0 0.0
        %698 = vmatpush1.msra.mxu0 %v666
        %699 = vmatprep.subr.mxu0 0.0
        %700 = vmatpush1.msra.mxu0 %v665
        %701 = vmatprep.subr.mxu0 0.0
        %702 = vmatpush1.msra.mxu0 %v664
        %703 = vmatprep.subr.mxu0 0.0
        %704 = vmatpush1.msra.mxu0 %v663
        %705 = vmatprep.subr.mxu0 0.0
        %706 = vmatpush1.msra.mxu0 %v662
        %707 = vmatprep.subr.mxu0 0.0
        %708 = vmatpush1.msra.mxu0 %v661
        %709 = vmatprep.subr.mxu0 0.0
        %710 = vmatpush2.msra.mxu0 0.0
        %711 = vmatprep.subr.mxu0 0.0
        %712 = vmatpush2.msra.mxu0 0.0
        %713 = vmatprep.subr.mxu0 0.0
        %714 = vmatpush2.msra.mxu0 0.0
        %715 = vmatprep.subr.mxu0 0.0
        %716 = vmatpush2.msra.mxu0 0.0
        %717 = vmatprep.subr.mxu0 0.0
        %718 = vmatpush2.msra.mxu0 0.0
        %719 = vmatprep.subr.mxu0 0.0
        %720 = vmatpush2.msra.mxu0 0.0
        %721 = vmatprep.subr.mxu0 0.0
        %722 = vmatpush2.msra.mxu0 0.0
        %723 = vmatprep.subr.mxu0 0.0
        %724 = vmatpush2.msra.mxu0 0.0
        %725 = vmatprep.subr.mxu0 0.0
        %726 = vmatpush2.msra.mxu0 0.0
        %727 = vmatprep.subr.mxu0 0.0
        %728 = vmatpush2.msra.mxu0 0.0
        %729 = vmatprep.subr.mxu0 0.0
        %730 = vmatpush2.msra.mxu0 0.0
        %731 = vmatprep.subr.mxu0 0.0
        %732 = vmatpush2.msra.mxu0 0.0
        %733 = vmatprep.subr.mxu0 0.0
        %734 = vmatpush2.msra.mxu0 0.0
        %735 = vmatprep.subr.mxu0 0.0
        %736 = vmatpush2.msra.mxu0 0.0
        %737 = vmatprep.subr.mxu0 0.0
        %738 = vmatpush2.msra.mxu0 0.0
        %739 = vmatprep.subr.mxu0 0.0
        %740 = vmatpush2.msra.mxu0 0.0
        %741 = vmatprep.mubr.f32.mxu0 0.0
        %742 = vmatmul.mubr.f32.gmra.mxu0 %v567
        %v743 = vpop.f32.mrf.mxu0
        %v744 = vadd.f32 0.0, %v743
        %v745 = vpop.f32.mrf.mxu0
        %746 = vmatprep.mubr.f32.mxu0 0.0
        %747 = vmatmul.mubr.f32.gmra.mxu0 %v568
        %v748 = vpop.f32.mrf.mxu0
        %v749 = vadd.f32 0.0, %v748
        %v750 = vpop.f32.mrf.mxu0
        %751 = vdwg.mxu0
        %s752 = scalar_lea.vmem [#allocation7], 256
        %v753 = vld [vmem:[%s752] sm:$0xff]
        %v754 = vld [vmem:[%s752 + $0x8] sm:$0xff]
        %v755 = vld [vmem:[%s752 + $0x10] sm:$0xff]
        %v756 = vld [vmem:[%s752 + $0x18] sm:$0xff]
        %v757 = vld [vmem:[%s752 + $0x20] sm:$0xff]
        %v758 = vld [vmem:[%s752 + $0x28] sm:$0xff]
        %v759 = vld [vmem:[%s752 + $0x30] sm:$0xff]
        %v760 = vld [vmem:[%s752 + $0x38] sm:$0xff]
        %v761 = vld [vmem:[%s752 + $0x40] sm:$0xff]
        %v762 = vld [vmem:[%s752 + $0x48] sm:$0xff]
        %v763 = vld [vmem:[%s752 + $0x50] sm:$0xff]
        %v764 = vld [vmem:[%s752 + $0x58] sm:$0xff]
        %v765 = vld [vmem:[%s752 + $0x60] sm:$0xff]
        %v766 = vld [vmem:[%s752 + $0x68] sm:$0xff]
        %v767 = vld [vmem:[%s752 + $0x70] sm:$0xff]
        %v768 = vld [vmem:[%s752 + $0x78] sm:$0xff]
        %769 = vmatprep.subr.mxu0 0.0
        %770 = vmatpush1.msra.mxu0 %v768
        %771 = vmatprep.subr.mxu0 0.0
        %772 = vmatpush1.msra.mxu0 %v767
        %773 = vmatprep.subr.mxu0 0.0
        %774 = vmatpush1.msra.mxu0 %v766
        %775 = vmatprep.subr.mxu0 0.0
        %776 = vmatpush1.msra.mxu0 %v765
        %777 = vmatprep.subr.mxu0 0.0
        %778 = vmatpush1.msra.mxu0 %v764
        %779 = vmatprep.subr.mxu0 0.0
        %780 = vmatpush1.msra.mxu0 %v763
        %781 = vmatprep.subr.mxu0 0.0
        %782 = vmatpush1.msra.mxu0 %v762
        %783 = vmatprep.subr.mxu0 0.0
        %784 = vmatpush1.msra.mxu0 %v761
        %785 = vmatprep.subr.mxu0 0.0
        %786 = vmatpush1.msra.mxu0 %v760
        %787 = vmatprep.subr.mxu0 0.0
        %788 = vmatpush1.msra.mxu0 %v759
        %789 = vmatprep.subr.mxu0 0.0
        %790 = vmatpush1.msra.mxu0 %v758
        %791 = vmatprep.subr.mxu0 0.0
        %792 = vmatpush1.msra.mxu0 %v757
        %793 = vmatprep.subr.mxu0 0.0
        %794 = vmatpush1.msra.mxu0 %v756
        %795 = vmatprep.subr.mxu0 0.0
        %796 = vmatpush1.msra.mxu0 %v755
        %797 = vmatprep.subr.mxu0 0.0
        %798 = vmatpush1.msra.mxu0 %v754
        %799 = vmatprep.subr.mxu0 0.0
        %800 = vmatpush1.msra.mxu0 %v753
        %801 = vmatprep.subr.mxu0 0.0
        %802 = vmatpush2.msra.mxu0 0.0
        %803 = vmatprep.subr.mxu0 0.0
        %804 = vmatpush2.msra.mxu0 0.0
        %805 = vmatprep.subr.mxu0 0.0
        %806 = vmatpush2.msra.mxu0 0.0
        %807 = vmatprep.subr.mxu0 0.0
        %808 = vmatpush2.msra.mxu0 0.0
        %809 = vmatprep.subr.mxu0 0.0
        %810 = vmatpush2.msra.mxu0 0.0
        %811 = vmatprep.subr.mxu0 0.0
        %812 = vmatpush2.msra.mxu0 0.0
        %813 = vmatprep.subr.mxu0 0.0
        %814 = vmatpush2.msra.mxu0 0.0
        %815 = vmatprep.subr.mxu0 0.0
        %816 = vmatpush2.msra.mxu0 0.0
        %817 = vmatprep.subr.mxu0 0.0
        %818 = vmatpush2.msra.mxu0 0.0
        %819 = vmatprep.subr.mxu0 0.0
        %820 = vmatpush2.msra.mxu0 0.0
        %821 = vmatprep.subr.mxu0 0.0
        %822 = vmatpush2.msra.mxu0 0.0
        %823 = vmatprep.subr.mxu0 0.0
        %824 = vmatpush2.msra.mxu0 0.0
        %825 = vmatprep.subr.mxu0 0.0
        %826 = vmatpush2.msra.mxu0 0.0
        %827 = vmatprep.subr.mxu0 0.0
        %828 = vmatpush2.msra.mxu0 0.0
        %829 = vmatprep.subr.mxu0 0.0
        %830 = vmatpush2.msra.mxu0 0.0
        %831 = vmatprep.subr.mxu0 0.0
        %832 = vmatpush2.msra.mxu0 0.0
        %833 = vmatprep.mubr.f32.mxu0 0.0
        %834 = vmatmul.mubr.f32.gmra.mxu0 %v567
        %v835 = vpop.f32.mrf.mxu0
        %v836 = vadd.f32 0.0, %v835
        %v837 = vpop.f32.mrf.mxu0
        %838 = vmatprep.mubr.f32.mxu0 0.0
        %839 = vmatmul.mubr.f32.gmra.mxu0 %v568
        %v840 = vpop.f32.mrf.mxu0
        %v841 = vadd.f32 0.0, %v840
        %v842 = vpop.f32.mrf.mxu0
        %843 = vdwg.mxu0
        %v846 = vrot.slane %v652, 7
        %v847 = vrot.slane %v657, 7
        %v848 = vsel %vm534, %v846, %v847
        %v851 = vsel %vm534, 0.0, %v846
        %v854 = vrot.slane %v836, 1
        %v855 = vrot.slane %v841, 1
        %v856 = vsel %vm543, %v854, %v855
        %v859 = vsel %vm543, %v855, 0.0
        %v860 = vadd.f32 %v851, %v744
        %v861 = vadd.f32 %v848, %v749
        %v862 = vadd.f32 %v860, %v856
        %v863 = vadd.f32 %v861, %v859
        %v864 = vld [vmem:[%s4] sm:$0x1]
        %v866 = vlaneseq
        %v867 = vshrl.u32 %v866, 7
        %v868 = vsub.s32 0, %v867
        %v869 = vrot.slane %v864, %v868
        %v871 = vadd.f32 %v862, %v869
        %v872 = vadd.f32 %v863, %v869
        %vm873 = vcmp.gt.f32.partialorder %v871, 0.0
        %vm874 = vcmp.gt.f32.partialorder %v872, 0.0
        %v875 = vmul.f32 %v871, 0.01
        %v876 = vmul.f32 %v872, 0.01
        %v877 = vsel %vm873, %v871, %v875
        %v878 = vsel %vm874, %v872, %v876
        %879 = vst [vmem:[%s271] sm:$0xff] %v877
        %880 = vst [vmem:[%s271 + $0x8] sm:$0xff] %v878
        %s881 = sand.u32 %s141, 1
        %s882 = scalar_lea.sflag [#allocation4], %s881
        %s883 = sand.u32 %s141, 1
        %s884 = smul.addr %s883, 16
        %s885 = scalar_lea.vmem [#allocation8], %s884
        // Predicated region
        $region53: #{tpu_custom_call.1} parent=39 // pred_check
          %p886 = pneg %p151
        $region54: #{tpu_custom_call.1} parent=39 // pred_check_branch
          %888 = sbr.rel (%p886) target = $region56
        $region55: #{tpu_custom_call.1} parent=39 // pred_region
          %s890 = ssub.s32 256, 256
          %891 = vsyncadd %s882, %s890
          %s892 = smul.addr %s23, 2
          %s893 = smul.addr %s892, 128
          %s894 = scalar_lea.hbm %s5, %s893
          %s895 = sshll.u32 %s885, 4
          %s896 = int_to_ptr.vmem [resolvable:$true] %s895
          %901 = dma.vmem_to_hbm [thread:$0]  %s896, 256, %s894, %s882, 128, 128, 8
        $region56: #{tpu_custom_call.1} parent=39 // pred_fallthru
          _
      $region40: #{tpu_custom_call.1} parent=5 // pred_fallthru
        _
      %p902 = scmp.le.s32.totalorder 2, %s18
      // Predicated region
      $region57: #{tpu_custom_call.1} parent=5 // pred_check
        %p903 = pneg %p902
      $region58: #{tpu_custom_call.1} parent=5 // pred_check_branch
        %905 = sbr.rel (%p903) target = $region60
      $region59: #{tpu_custom_call.1} parent=5 // pred_region
        %s906 = ssub.s32 %s18, 2
        // Predicated region
        $region61: #{tpu_custom_call.1} parent=59 // pred_check
          %p907 = pneg %p157
        $region62: #{tpu_custom_call.1} parent=59 // pred_check_branch
          %909 = sbr.rel (%p907) target = $region64
        $region63: #{tpu_custom_call.1} parent=59 // pred_region
          %s910 = sand.u32 %s142, 1
          %s911 = scalar_lea.sflag [#allocation4], %s910
          %s912 = sand.u32 %s142, 1
          %s913 = smul.addr %s912, 16
          %s914 = scalar_lea.vmem [#allocation8], %s913
          %915 = dma.done %s911, 256
        $region64: #{tpu_custom_call.1} parent=59 // pred_fallthru
          _
      $region60: #{tpu_custom_call.1} parent=5 // pred_fallthru
        _
    $region6: #{tpu_custom_call.1} parent=1 // loop_footer
      %s22 = sadd.s32 1, %s18
    $region7: #{tpu_custom_call.1} parent=1 // loop_footer_branch
      %17 = sbr.rel target = $region3
    $region8: #{tpu_custom_call.1} parent=1 // loop_exit
      _
    %916 = vsyncpa [#allocation3], 1
    %s917 = scalar_lea.sflag [#allocation3], 1
    %918 = vsyncpa %s917, 1
    %919 = vsyncpa [#allocation6], 1
    %920 = vsyncpa [#allocation4], 1
    %s921 = scalar_lea.sflag [#allocation4], 1
    %922 = vsyncpa %s921, 1

</llo_original>
